<compile_context>
chip_gen: v7x
topology: tpu7x:2x2x1
jax: 0.10.0
libtpu: 0.0.40
codegen_flags: <defaults>
</compile_context>

<pallas_src>
import math

import jax
import jax.numpy as jnp
from jax import lax
from jax.experimental import pallas as pl
from jax.experimental.pallas import tpu as pltpu


BN_EPS = 1e-5
_LANE = 128
_VMEM_BLOCK_BUDGET = 28 * 1024 * 1024   # target bytes for the per-step working set
_VMEM_LIMIT = 48 * 1024 * 1024          # scoped limit, safe on v5e/v6e/v7x


def _round_up(x, m):
    return ((x + m - 1) // m) * m


def _pad_last(a, target):
    amt = target - a.shape[-1]
    if amt == 0:
        return a
    return jnp.pad(a, [(0, 0)] * (a.ndim - 1) + [(0, amt)])


def _choose_t_tile(t_out, v, bytes_per_row):
    """Largest time tile whose per-step working set fits the VMEM budget.
    Uses a cdiv grid; the last (possibly partial) tile is masked in the stats."""
    rows = max(1, _VMEM_BLOCK_BUDGET // max(1, bytes_per_row))
    return max(1, min(t_out, rows // max(1, v)))


def _build_lhs(x_win, tap_offsets, rows):
    """(rows, len(taps)*C) im2col tile from static row-shifted slices of the
    halo'd window; the single jnp.dot that follows keeps all accumulation in
    the MXU (contraction dim = K*C_in instead of C_in)."""
    if len(tap_offsets) == 1 and tap_offsets[0] == 0 and x_win.shape[0] == rows:
        return x_win
    # TODO(synk): for V % 8 != 0 workloads (e.g. V=25) these row shifts are
    # sublane-misaligned; the single concat centralizes the relayout cost.
    return jnp.concatenate([x_win[o:o + rows, :] for o in tap_offsets], axis=-1)


def _make_stats_kernel(tap_offsets, rows, num_t, tile_t, t_out, v):
    """Pass 1: conv (recomputed, never written to HBM) + per-tile BN partials."""
    needs_mask = (t_out % tile_t) != 0

    def kernel(x_ref, w_ref, s1_ref, s2_ref):
        lhs = _build_lhs(x_ref[0], tap_offsets, rows)
        y = jnp.dot(lhs, w_ref[...], preferred_element_type=jnp.float32)
        if needs_mask:
            ti = pl.program_id(0) % num_t
            valid = jnp.minimum(rows, (t_out - ti * tile_t) * v)
            row_ids = lax.broadcasted_iota(jnp.int32, y.shape, 0)
            y = jnp.where(row_ids < valid, y, 0.0)
        s1_ref[0] = jnp.sum(y, axis=0, keepdims=True)
        s2_ref[0] = jnp.sum(y * y, axis=0, keepdims=True)

    return kernel


def _make_apply_kernel(tap_offsets, rows):
    """Pass 2: recompute the conv and apply the fused BN affine in one pass."""

    def kernel(x_ref, w_ref, scale_ref, shift_ref, o_ref):
        lhs = _build_lhs(x_ref[0], tap_offsets, rows)
        y = jnp.dot(lhs, w_ref[...], preferred_element_type=jnp.float32)
        o_ref[0] = y * scale_ref[...] + shift_ref[...]

    return kernel


def unit_tcn_forward(x, conv_weight, gamma, beta, *, kernel_size=9, stride=1):
    """x: (N, C_in, T, V) float32 (NCHW, H=T, W=V). Returns (N, C_out, T_out, V)."""
    N, C_in, T, V = x.shape
    C_out = conv_weight.shape[0]
    K = kernel_size
    pad = (K - 1) // 2
    T_out = (T + 2 * pad - K) // stride + 1
    C_pad = _round_up(C_out, _LANE)
    kc = K * C_in

    # --- glue: channels-last, temporal zero pad, bf16 MXU operands ---
    # TODO(synk): NCHW<->NHWC transposes kept at the interface boundary; a fused
    # channels-last network would drop them.
    x_cl = jnp.transpose(x, (0, 2, 3, 1)).astype(jnp.bfloat16)      # (N, T, V, C_in)
    x_cl = jnp.pad(x_cl, ((0, 0), (pad, pad), (0, 0), (0, 0)))      # (N, T+2p, V, C_in)

    # weight (C_out, C_in, K, 1) -> (K*C_in, C_pad): taps live in the contraction.
    w = jnp.transpose(conv_weight[..., 0], (2, 1, 0)).reshape(kc, C_out)
    w = _pad_last(w, C_pad).astype(jnp.bfloat16)
    # Note: nn.Conv2d bias is zero-initialized by conv_init, so it is omitted.

    if stride == 1:
        c_eff = C_in
        bytes_per_row = (2 * 2 * C_in        # halo'd x tile bf16 (double-buffered)
                         + 2 * kc            # im2col lhs bf16
                         + 4 * C_pad         # conv accumulator f32
                         + 2 * 4 * C_pad)    # f32 output block (double-buffered)
        Tt = _choose_t_tile(T_out, V, bytes_per_row)
        num_t = pl.cdiv(T_out, Tt)
        R = Tt * V
        H = (Tt + K - 1) * V
        # pad time so the last (partial) tile's halo'd window is in range
        x_cl = jnp.pad(x_cl, ((0, 0), (0, num_t * Tt - T_out), (0, 0), (0, 0)))
        # Halo'd overlapping time tiles (only (K-1)/Tt of x duplicated), built once
        # in bf16 and consumed by both passes.
        # TODO(synk): could be replaced by windowed in-kernel DMA (pl.ANY) to drop
        # this extra HBM round trip; kept to preserve auto double-buffering and
        # the "parallel" (megacore-shardable) grid axis.
        if num_t == 1:
            x_tiles = x_cl.reshape(N, H, C_in)
        else:
            wins = [x_cl[:, ti * Tt: ti * Tt + Tt + K - 1] for ti in range(num_t)]
            x_tiles = jnp.stack(wins, axis=1).reshape(N * num_t, H, C_in)
        taps = tuple(k * V for k in range(K))
    else:
        # stride > 1: wrapper-side im2col (K-fold duplication only on this path).
        c_eff = kc
        bytes_per_row = 2 * 2 * kc + 4 * C_pad + 2 * 4 * C_pad
        Tt = _choose_t_tile(T_out, V, bytes_per_row)
        num_t = pl.cdiv(T_out, Tt)
        R = Tt * V
        H = R
        cols = [x_cl[:, k: k + (T_out - 1) * stride + 1: stride] for k in range(K)]
        lhs_full = jnp.stack(cols, axis=3).reshape(N, T_out * V, kc)
        lhs_full = jnp.pad(lhs_full, ((0, 0), (0, num_t * Tt * V - T_out * V), (0, 0)))
        x_tiles = lhs_full.reshape(N * num_t, R, kc)
        taps = (0,)

    NB = N * num_t

    cparams = pltpu.CompilerParams(
        dimension_semantics=("parallel",),
        vmem_limit_bytes=_VMEM_LIMIT,
    )

    conv_flops = 2 * NB * R * kc * C_pad
    x_bytes = int(x_tiles.size) * 2
    w_bytes = int(w.size) * 2

    # ---- pass 1: conv (stats only, conv output never touches HBM) ----
    s1, s2 = pl.pallas_call(
        _make_stats_kernel(taps, R, num_t, Tt, T_out, V),
        out_shape=(
            jax.ShapeDtypeStruct((NB, 1, C_pad), jnp.float32),
            jax.ShapeDtypeStruct((NB, 1, C_pad), jnp.float32),
        ),
        grid=(NB,),
        in_specs=[
            pl.BlockSpec((1, H, c_eff), lambda i: (i, 0, 0)),
            pl.BlockSpec((kc, C_pad), lambda i: (0, 0)),
        ],
        out_specs=(
            pl.BlockSpec((1, 1, C_pad), lambda i: (i, 0, 0)),
            pl.BlockSpec((1, 1, C_pad), lambda i: (i, 0, 0)),
        ),
        compiler_params=cparams,
        cost_estimate=pl.CostEstimate(flops=conv_flops, transcendentals=0,
                                      bytes_accessed=x_bytes + w_bytes + 8 * NB * C_pad),
    )(x_tiles, w)

    # ---- tiny per-channel glue: global batch stats -> fused BN affine ----
    count = float(N * T_out * V)                 # true count (padded rows masked)
    s1 = jnp.sum(s1[:, 0, :], axis=0)
    s2 = jnp.sum(s2[:, 0, :], axis=0)
    mean = s1 / count
    # TODO(synk): single-pass E[y^2]-E[y]^2 variance in f32 (clamped); adequate
    # at these magnitudes but less robust than a two-pass variance.
    var = jnp.maximum(s2 / count - mean * mean, 0.0)
    inv = lax.rsqrt(var + BN_EPS)
    gamma_p = _pad_last(gamma.reshape(-1).astype(jnp.float32), C_pad)
    beta_p = _pad_last(beta.reshape(-1).astype(jnp.float32), C_pad)
    scale = (gamma_p * inv).reshape(1, C_pad)
    shift = (beta_p - mean * gamma_p * inv).reshape(1, C_pad)

    # ---- pass 2: recompute conv + fused BN affine, single lane-dense write ----
    out_pad = pl.pallas_call(
        _make_apply_kernel(taps, R),
        out_shape=jax.ShapeDtypeStruct((NB, R, C_pad), jnp.float32),
        grid=(NB,),
        in_specs=[
            pl.BlockSpec((1, H, c_eff), lambda i: (i, 0, 0)),
            pl.BlockSpec((kc, C_pad), lambda i: (0, 0)),
            pl.BlockSpec((1, C_pad), lambda i: (0, 0)),
            pl.BlockSpec((1, C_pad), lambda i: (0, 0)),
        ],
        out_specs=pl.BlockSpec((1, R, C_pad), lambda i: (i, 0, 0)),
        compiler_params=cparams,
        cost_estimate=pl.CostEstimate(flops=conv_flops + 2 * NB * R * C_pad,
                                      transcendentals=0,
                                      bytes_accessed=x_bytes + w_bytes + 4 * NB * R * C_pad),
    )(x_tiles, w, scale, shift)

    # --- glue: drop time/channel padding, back to NCHW ---
    out = out_pad.reshape(N, num_t * Tt, V, C_pad)[:, :T_out, :, :C_out]
    return jnp.transpose(out, (0, 3, 1, 2))


def reference_forward(x, conv_weight, gamma, beta, *, kernel_size=9, stride=1):
    """Pure-JAX f32 reference (conv + training-mode BN) for a correctness check."""
    pad = (kernel_size - 1) // 2
    y = lax.conv_general_dilated(
        x, conv_weight,
        window_strides=(stride, 1),
        padding=((pad, pad), (0, 0)),
        dimension_numbers=("NCHW", "OIHW", "NCHW"),
    )
    mean = jnp.mean(y, axis=(0, 2, 3), keepdims=True)
    var = jnp.mean((y - mean) ** 2, axis=(0, 2, 3), keepdims=True)
    y_hat = (y - mean) * lax.rsqrt(var + BN_EPS)
    return y_hat * gamma.reshape(1, -1, 1, 1) + beta.reshape(1, -1, 1, 1)


if __name__ == "__main__":
    # Small shapes consistent with the module: N=2, C_in=4, C_out=8, T=16, V=16.
    N, C_in, C_out, T, V, K = 2, 4, 8, 16, 16, 9

    key = jax.random.PRNGKey(0)
    kx, kw = jax.random.split(key)

    x = jax.random.normal(kx, (N, C_in, T, V), dtype=jnp.float32)

    # conv_init: kaiming_normal_(mode='fan_out') -> std = sqrt(2 / (C_out*K*1)); bias = 0
    fan_out = C_out * K * 1
    std = math.sqrt(2.0 / fan_out)
    conv_weight = std * jax.random.normal(kw, (C_out, C_in, K, 1), dtype=jnp.float32)

    # bn_init(bn, 1): weight = 1, bias = 0
    gamma = jnp.ones((C_out,), dtype=jnp.float32)
    beta = jnp.zeros((C_out,), dtype=jnp.float32)

    # stride == 1 (halo'd-tile / in-kernel im2col path)
    out = unit_tcn_forward(x, conv_weight, gamma, beta, kernel_size=K, stride=1)
    out = jax.block_until_ready(out)
    ref = reference_forward(x, conv_weight, gamma, beta, kernel_size=K, stride=1)
    assert out.shape == ref.shape == (N, C_out, T, V), out.shape
    err = float(jnp.max(jnp.abs(out - ref)))
    # bf16 MXU operands with f32 accumulation: loosen the f32 tolerance accordingly.
    assert err < 2e-2, err

    # stride == 2 (wrapper-side im2col path)
    out2 = unit_tcn_forward(x, conv_weight, gamma, beta, kernel_size=K, stride=2)
    out2 = jax.block_until_ready(out2)
    ref2 = reference_forward(x, conv_weight, gamma, beta, kernel_size=K, stride=2)
    assert out2.shape == ref2.shape, (out2.shape, ref2.shape)
    err2 = float(jnp.max(jnp.abs(out2 - ref2)))
    assert err2 < 2e-2, err2

    print("KERNEL_OK")
</pallas_src>

<mosaic_0001>
module attributes {stable_mosaic.version = 11 : i64} {
  func.func @kernel(%arg0: i32, %arg1: memref<1x384x4xbf16, #tpu.memory_space<vmem>>, %arg2: memref<36x128xbf16, #tpu.memory_space<vmem>>, %arg3: memref<1x1x128xf32, #tpu.memory_space<vmem>>, %arg4: memref<1x1x128xf32, #tpu.memory_space<vmem>>) attributes {dimension_semantics = [#tpu.dimension_semantics<parallel>], iteration_bounds = array<i64: 2>, scalar_prefetch = 0 : i64, scratch_operands = 0 : i64, tpu.core_type = #tpu.core_type<tc>, window_params = [{transform_indices = @transform_0, window_bounds = array<i64: 1, 384, 4>}, {pipeline_mode = #tpu.pipeline_mode<synchronous>, transform_indices = @transform_1, window_bounds = array<i64: 36, 128>}, {transform_indices = @transform_2, window_bounds = array<i64: 1, 1, 128>}, {transform_indices = @transform_3, window_bounds = array<i64: 1, 1, 128>}]} {
    %c0 = arith.constant 0 : index
    %c0_0 = arith.constant 0 : index
    %c0_1 = arith.constant 0 : index
    %0 = vector.load %arg1[%c0, %c0_0, %c0_1] : memref<1x384x4xbf16, #tpu.memory_space<vmem>>, vector<1x384x4xbf16>
    %1 = vector.shape_cast %0 : vector<1x384x4xbf16> to vector<384x4xbf16>
    %2 = vector.extract_strided_slice %1 {offsets = [0, 0], sizes = [256, 4], strides = [1, 1]} : vector<384x4xbf16> to vector<256x4xbf16>
    %3 = vector.extract_strided_slice %1 {offsets = [16, 0], sizes = [256, 4], strides = [1, 1]} : vector<384x4xbf16> to vector<256x4xbf16>
    %4 = vector.extract_strided_slice %1 {offsets = [32, 0], sizes = [256, 4], strides = [1, 1]} : vector<384x4xbf16> to vector<256x4xbf16>
    %5 = vector.extract_strided_slice %1 {offsets = [48, 0], sizes = [256, 4], strides = [1, 1]} : vector<384x4xbf16> to vector<256x4xbf16>
    %6 = vector.extract_strided_slice %1 {offsets = [64, 0], sizes = [256, 4], strides = [1, 1]} : vector<384x4xbf16> to vector<256x4xbf16>
    %7 = vector.extract_strided_slice %1 {offsets = [80, 0], sizes = [256, 4], strides = [1, 1]} : vector<384x4xbf16> to vector<256x4xbf16>
    %8 = vector.extract_strided_slice %1 {offsets = [96, 0], sizes = [256, 4], strides = [1, 1]} : vector<384x4xbf16> to vector<256x4xbf16>
    %9 = vector.extract_strided_slice %1 {offsets = [112, 0], sizes = [256, 4], strides = [1, 1]} : vector<384x4xbf16> to vector<256x4xbf16>
    %10 = vector.extract_strided_slice %1 {offsets = [128, 0], sizes = [256, 4], strides = [1, 1]} : vector<384x4xbf16> to vector<256x4xbf16>
    %11 = tpu.concatenate %2, %3, %4, %5, %6, %7, %8, %9, %10 in 1 : vector<256x4xbf16>, vector<256x4xbf16>, vector<256x4xbf16>, vector<256x4xbf16>, vector<256x4xbf16>, vector<256x4xbf16>, vector<256x4xbf16>, vector<256x4xbf16>, vector<256x4xbf16> -> vector<256x36xbf16>
    %c0_2 = arith.constant 0 : index
    %c0_3 = arith.constant 0 : index
    %12 = vector.load %arg2[%c0_2, %c0_3] : memref<36x128xbf16, #tpu.memory_space<vmem>>, vector<36x128xbf16>
    %cst = arith.constant dense<0.000000e+00> : vector<256x128xf32>
    %13 = tpu.matmul %11, %12, %cst {dimension_numbers = #tpu.dot_dimension_numbers<[1], [0], [0], [1], [0, 0, 1, 1], [], []>} : vector<256x36xbf16>, vector<36x128xbf16>, vector<256x128xf32> -> vector<256x128xf32>
    %cst_4 = arith.constant dense<0.000000e+00> : vector<128xf32>
    %14 = vector.multi_reduction <add>, %13, %cst_4 [0] : vector<256x128xf32> to vector<128xf32>
    %15 = vector.shape_cast %14 : vector<128xf32> to vector<1x128xf32>
    %c0_5 = arith.constant 0 : index
    %c0_6 = arith.constant 0 : index
    %c0_7 = arith.constant 0 : index
    %16 = vector.load %arg3[%c0_5, %c0_6, %c0_7] : memref<1x1x128xf32, #tpu.memory_space<vmem>>, vector<1x1x128xf32>
    %17 = vector.shape_cast %16 : vector<1x1x128xf32> to vector<1x128xf32>
    %18 = vector.shape_cast %15 : vector<1x128xf32> to vector<1x1x128xf32>
    tpu.vector_store %arg3[%c0_5, %c0_6, %c0_7], %18 {strides = array<i32>} : memref<1x1x128xf32, #tpu.memory_space<vmem>>, vector<1x1x128xf32>,
    %19 = arith.mulf %13, %13 : vector<256x128xf32>
    %cst_8 = arith.constant dense<0.000000e+00> : vector<128xf32>
    %20 = vector.multi_reduction <add>, %19, %cst_8 [0] : vector<256x128xf32> to vector<128xf32>
    %21 = vector.shape_cast %20 : vector<128xf32> to vector<1x128xf32>
    %c0_9 = arith.constant 0 : index
    %c0_10 = arith.constant 0 : index
    %c0_11 = arith.constant 0 : index
    %22 = vector.load %arg4[%c0_9, %c0_10, %c0_11] : memref<1x1x128xf32, #tpu.memory_space<vmem>>, vector<1x1x128xf32>
    %23 = vector.shape_cast %22 : vector<1x1x128xf32> to vector<1x128xf32>
    %24 = vector.shape_cast %21 : vector<1x128xf32> to vector<1x1x128xf32>
    tpu.vector_store %arg4[%c0_9, %c0_10, %c0_11], %24 {strides = array<i32>} : memref<1x1x128xf32, #tpu.memory_space<vmem>>, vector<1x1x128xf32>,
    return
  }
  func.func @transform_0(%arg0: i32) -> (i32, i32, i32) {
    %c0_i32 = arith.constant 0 : i32
    %c0_i32_0 = arith.constant 0 : i32
    %c0_i32_1 = arith.constant 0 : i32
    return %arg0, %c0_i32, %c0_i32_0 : i32, i32, i32
  }
  func.func @transform_1(%arg0: i32) -> (i32, i32) {
    %c0_i32 = arith.constant 0 : i32
    %c0_i32_0 = arith.constant 0 : i32
    %c0_i32_1 = arith.constant 0 : i32
    return %c0_i32, %c0_i32_0 : i32, i32
  }
  func.func @transform_2(%arg0: i32) -> (i32, i32, i32) {
    %c0_i32 = arith.constant 0 : i32
    %c0_i32_0 = arith.constant 0 : i32
    %c0_i32_1 = arith.constant 0 : i32
    return %arg0, %c0_i32, %c0_i32_0 : i32, i32, i32
  }
  func.func @transform_3(%arg0: i32) -> (i32, i32, i32) {
    %c0_i32 = arith.constant 0 : i32
    %c0_i32_0 = arith.constant 0 : i32
    %c0_i32_1 = arith.constant 0 : i32
    return %arg0, %c0_i32, %c0_i32_0 : i32, i32, i32
  }
}

</mosaic_0001>

<llo_original>
// kernel: tpu_custom_call.1
$region0: #{tpu_custom_call.1}
  #allocation0 [shape = 'u32[]', space=smem, size = 0x4, offset = 0x4, fixed_abs, tag = 'smem constant byte address 0x4 - core index']
  #allocation1 [shape = 'u32[144,128]{1,0:T(1,128)}', space=vmem, size = 0x12000, scoped, tag = 'internal scratch']
  %s0 = inlined_call_operand.vmem [shape: bf16[2,384,4], index: 0, kind: input, shape index: {}]
  %s1 = inlined_call_operand.vmem [shape: bf16[36,128], index: 1, kind: input, shape index: {}]
  %s2 = inlined_call_operand.hbm [shape: f32[2,1,128], index: 2, kind: output, shape index: {0}]
  %s3 = inlined_call_operand.hbm [shape: f32[2,1,128], index: 3, kind: output, shape index: {1}]
  %4 = xla_tuple %s2, %s3
  %s5 = sld [smem:[#allocation0]]
  $region49: #{tpu_custom_call.1} parent=0
    _
  %s7 = ssub.s32 1, %s5
  %s8 = scalar_select 0, %s7, %s5
  $region1: #{tpu_custom_call.1} parent=0
    #allocation2 [shape = 'u8[1024]{0}', space=vmem, size = 0x400, scoped, tag = 'output window, operand 0']
    #allocation3 [shape = 's32[2]{0}', space=sflag, size = 0x8, scoped, tag = 'scoped memory for tpu_custom_call.1']
    #allocation4 [shape = 'u8[1024]{0}', space=vmem, size = 0x400, scoped, tag = 'output window, operand 1']
    #allocation5 [shape = 's32[2]{0}', space=sflag, size = 0x8, scoped, tag = 'scoped memory for tpu_custom_call.1']
    %9 = vsyncpa [#allocation3], 0
    %s10 = scalar_lea.sflag [#allocation3], 1
    %11 = vsyncpa %s10, 0
    %12 = vsyncpa [#allocation5], 0
    %s13 = scalar_lea.sflag [#allocation5], 1
    %14 = vsyncpa %s13, 0
    loop: start=0, step=1, limit=4
    $region2: #{tpu_custom_call.1} parent=1 // loop_pre_header
      _
    $region3: #{tpu_custom_call.1} parent=1 // loop_header
      %s16 = sphi 0, %s20
      %p17 = scmp.ge.s32.totalorder %s16, 4
      %s26 = sphi 0, %s28
      %s29 = sphi 0, %s26
      %s30 = sphi 0, %s29
      %s46 = sphi 0, %s30
      %s50 = sphi 0, %s50
      %s52 = sphi 0, %s50
      %s53 = sphi 0, %s52
      %s67 = sphi 0, %s53
      %s73 = sphi 0, %s75
      %s76 = sphi 0, %s73
      %s77 = sphi 0, %s76
      %s93 = sphi 0, %s77
      %s99 = sphi 0, %s101
      %s102 = sphi 0, %s99
      %s103 = sphi 0, %s102
      %s119 = sphi 0, %s103
    $region4: #{tpu_custom_call.1} parent=1 // loop_header_branch
      %19 = sbr.rel (%p17) target = $region8
    $region5: #{tpu_custom_call.1} parent=1 // loop_body
      %s21 = ssub.s32 %s16, 1
      %s22 = ssub.s32 %s16, 2
      %s23 = sadd.s32 %s16, 1
      %s24 = ssub.s32 %s16, %s23
      %p25 = scmp.eq.s32.totalorder %s24, 0
      %s27 = sadd.s32 %s26, 1
      %s28 = scalar_select %p25, %s26, %s27
      %p31 = pneg %p25
      %p32 = scmp.eq.s32.totalorder %s16, 1
      %p33 = por %p31, %p32
      %p34 = scmp.ne.s32.totalorder %s26, %s29
      %p35 = scmp.eq.s32.totalorder %s16, 0
      %p36 = por %p34, %p35
      %p37 = scmp.ne.s32.totalorder %s26, %s29
      %p38 = scmp.eq.s32.totalorder %s21, 1
      %p39 = por %p37, %p38
      %p40 = scmp.ne.s32.totalorder %s29, %s30
      %p41 = scmp.eq.s32.totalorder %s21, 0
      %p42 = por %p40, %p41
      %p43 = scmp.ne.s32.totalorder %s29, %s30
      %p44 = scmp.eq.s32.totalorder %s22, 1
      %p45 = por %p43, %p44
      %p47 = scmp.ne.s32.totalorder %s30, %s46
      %p48 = scmp.eq.s32.totalorder %s22, 0
      %p49 = por %p47, %p48
      %s51 = sadd.s32 %s50, 1
      %p54 = scmp.eq.s32.totalorder %s16, 1
      %p55 = scmp.ne.s32.totalorder %s50, %s52
      %p56 = scmp.eq.s32.totalorder %s16, 0
      %p57 = por %p55, %p56
      %p58 = scmp.ne.s32.totalorder %s50, %s52
      %p59 = scmp.eq.s32.totalorder %s21, 1
      %p60 = por %p58, %p59
      %p61 = scmp.ne.s32.totalorder %s52, %s53
      %p62 = scmp.eq.s32.totalorder %s21, 0
      %p63 = por %p61, %p62
      %p64 = scmp.ne.s32.totalorder %s52, %s53
      %p65 = scmp.eq.s32.totalorder %s22, 1
      %p66 = por %p64, %p65
      %p68 = scmp.ne.s32.totalorder %s53, %s67
      %p69 = scmp.eq.s32.totalorder %s22, 0
      %p70 = por %p68, %p69
      %s71 = ssub.s32 %s16, %s23
      %p72 = scmp.eq.s32.totalorder %s71, 0
      %s74 = sadd.s32 %s73, 1
      %s75 = scalar_select %p72, %s73, %s74
      %p78 = pneg %p72
      %p79 = scmp.eq.s32.totalorder %s16, 1
      %p80 = por %p78, %p79
      %p81 = scmp.ne.s32.totalorder %s73, %s76
      %p82 = scmp.eq.s32.totalorder %s16, 0
      %p83 = por %p81, %p82
      %p84 = scmp.ne.s32.totalorder %s73, %s76
      %p85 = scmp.eq.s32.totalorder %s21, 1
      %p86 = por %p84, %p85
      %p87 = scmp.ne.s32.totalorder %s76, %s77
      %p88 = scmp.eq.s32.totalorder %s21, 0
      %p89 = por %p87, %p88
      %p90 = scmp.ne.s32.totalorder %s76, %s77
      %p91 = scmp.eq.s32.totalorder %s22, 1
      %p92 = por %p90, %p91
      %p94 = scmp.ne.s32.totalorder %s77, %s93
      %p95 = scmp.eq.s32.totalorder %s22, 0
      %p96 = por %p94, %p95
      %s97 = ssub.s32 %s16, %s23
      %p98 = scmp.eq.s32.totalorder %s97, 0
      %s100 = sadd.s32 %s99, 1
      %s101 = scalar_select %p98, %s99, %s100
      %p104 = pneg %p98
      %p105 = scmp.eq.s32.totalorder %s16, 1
      %p106 = por %p104, %p105
      %p107 = scmp.ne.s32.totalorder %s99, %s102
      %p108 = scmp.eq.s32.totalorder %s16, 0
      %p109 = por %p107, %p108
      %p110 = scmp.ne.s32.totalorder %s99, %s102
      %p111 = scmp.eq.s32.totalorder %s21, 1
      %p112 = por %p110, %p111
      %p113 = scmp.ne.s32.totalorder %s102, %s103
      %p114 = scmp.eq.s32.totalorder %s21, 0
      %p115 = por %p113, %p114
      %p116 = scmp.ne.s32.totalorder %s102, %s103
      %p117 = scmp.eq.s32.totalorder %s22, 1
      %p118 = por %p116, %p117
      %p120 = scmp.ne.s32.totalorder %s103, %s119
      %p121 = scmp.eq.s32.totalorder %s22, 0
      %p122 = por %p120, %p121
      %p123 = scmp.le.s32.totalorder 1, %s16
      %p124 = scmp.lt.s32.totalorder %s16, 3
      %p125 = pnand %p123, %p124
      %p126 = pneg %p125
      // Predicated region
      $region9: #{tpu_custom_call.1} parent=5 // pred_check
        _
      $region10: #{tpu_custom_call.1} parent=5 // pred_check_branch
        %128 = sbr.rel (%p125) target = $region12
      $region11: #{tpu_custom_call.1} parent=5 // pred_region
        %s129 = ssub.s32 %s16, 1
        // Predicated region
        $region13: #{tpu_custom_call.1} parent=11 // pred_check
          %p130 = pneg %p63
        $region14: #{tpu_custom_call.1} parent=11 // pred_check_branch
          %132 = sbr.rel (%p130) target = $region16
        $region15: #{tpu_custom_call.1} parent=11 // pred_region
          _
        $region16: #{tpu_custom_call.1} parent=11 // pred_fallthru
          _
      $region12: #{tpu_custom_call.1} parent=5 // pred_fallthru
        _
      %p133 = scmp.lt.s32.totalorder %s16, 2
      // Predicated region
      $region17: #{tpu_custom_call.1} parent=5 // pred_check
        %p134 = pneg %p133
      $region18: #{tpu_custom_call.1} parent=5 // pred_check_branch
        %136 = sbr.rel (%p134) target = $region20
      $region19: #{tpu_custom_call.1} parent=5 // pred_region
        // Predicated region
        $region21: #{tpu_custom_call.1} parent=19 // pred_check
          %p137 = pneg %p36
        $region22: #{tpu_custom_call.1} parent=19 // pred_check_branch
          %139 = sbr.rel (%p137) target = $region24
        $region23: #{tpu_custom_call.1} parent=19 // pred_region
          %p140 = scmp.lt.s32.totalorder %s16, 1
          %s141 = scalar_select %p140, %s16, 1
          %s142 = smul.addr %s141, 48
          %s143 = smul.addr %s142, 4
          %s144 = scalar_lea.vmem %s0, %s143
        $region24: #{tpu_custom_call.1} parent=19 // pred_fallthru
          _
      $region20: #{tpu_custom_call.1} parent=5 // pred_fallthru
        _
      %p145 = scmp.le.s32.totalorder 1, %s16
      %p146 = scmp.lt.s32.totalorder %s16, 3
      %p147 = pnand %p145, %p146
      %p148 = pneg %p147
      // Predicated region
      $region25: #{tpu_custom_call.1} parent=5 // pred_check
        _
      $region26: #{tpu_custom_call.1} parent=5 // pred_check_branch
        %150 = sbr.rel (%p147) target = $region28
      $region27: #{tpu_custom_call.1} parent=5 // pred_region
        %s151 = ssub.s32 %s16, 1
        %p152 = scmp.lt.s32.totalorder %s21, 1
        %s153 = scalar_select %p152, %s21, 1
        %s154 = smul.addr %s153, 48
        %s155 = smul.addr %s154, 4
        %s156 = scalar_lea.vmem %s0, %s155
        %p157 = pneg %p42
        %p158 = pneg %p39
        %p159 = pneg %p63
        %p160 = pneg %p60
        %p161 = pneg %p89
        %p162 = pneg %p86
        %s163 = sand.u32 %s76, 1
        %s164 = scalar_lea.sflag [#allocation3], %s163
        %s165 = sand.u32 %s76, 1
        %s166 = scalar_lea.vmem [#allocation2], %s165
        %p167 = pneg %p115
        %p168 = pneg %p112
        %s169 = sand.u32 %s102, 1
        %s170 = scalar_lea.sflag [#allocation5], %s169
        %s171 = sand.u32 %s102, 1
        %s172 = scalar_lea.vmem [#allocation4], %s171
        %p173 = scmp.lt.s32.totalorder %s21, 1
        %s174 = scalar_select %p173, %s21, 1
        %s175 = smul.addr %s174, 48
        %s176 = smul.addr %s175, 4
        %s177 = scalar_lea.vmem %s0, %s176
        %v179 = vld [vmem:[%s177] sm:$0xf]
        %v180 = vld [vmem:[%s177 + $0x4] sm:$0xf]
        %v181 = vld [vmem:[%s177 + $0x8] sm:$0xf]
        %v182 = vld [vmem:[%s177 + $0xc] sm:$0xf]
        %v183 = vld [vmem:[%s177 + $0x10] sm:$0xf]
        %v184 = vld [vmem:[%s177 + $0x14] sm:$0xf]
        %v185 = vld [vmem:[%s177 + $0x18] sm:$0xf]
        %v186 = vld [vmem:[%s177 + $0x1c] sm:$0xf]
        %v187 = vld [vmem:[%s177 + $0x20] sm:$0xf]
        %v188 = vld [vmem:[%s177 + $0x24] sm:$0xf]
        %v189 = vld [vmem:[%s177 + $0x28] sm:$0xf]
        %v190 = vld [vmem:[%s177 + $0x2c] sm:$0xf]
        %v191 = vld [vmem:[%s177 + $0x30] sm:$0xf]
        %v192 = vld [vmem:[%s177 + $0x34] sm:$0xf]
        %v193 = vld [vmem:[%s177 + $0x38] sm:$0xf]
        %v194 = vld [vmem:[%s177 + $0x3c] sm:$0xf]
        %v195 = vld [vmem:[%s177 + $0x40] sm:$0xf]
        %v196 = vld [vmem:[%s177 + $0x44] sm:$0xf]
        %v197 = vld [vmem:[%s177 + $0x48] sm:$0xf]
        %v198 = vld [vmem:[%s177 + $0x4c] sm:$0xf]
        %v199 = vld [vmem:[%s177 + $0x50] sm:$0xf]
        %v200 = vld [vmem:[%s177 + $0x54] sm:$0xf]
        %v201 = vld [vmem:[%s177 + $0x58] sm:$0xf]
        %v202 = vld [vmem:[%s177 + $0x5c] sm:$0xf]
        %v203 = vld [vmem:[%s177 + $0x60] sm:$0xf]
        %v204 = vld [vmem:[%s177 + $0x64] sm:$0xf]
        %v205 = vld [vmem:[%s177 + $0x68] sm:$0xf]
        %v206 = vld [vmem:[%s177 + $0x6c] sm:$0xf]
        %v207 = vld [vmem:[%s177 + $0x70] sm:$0xf]
        %v208 = vld [vmem:[%s177 + $0x74] sm:$0xf]
        %v209 = vld [vmem:[%s177 + $0x78] sm:$0xf]
        %v210 = vld [vmem:[%s177 + $0x7c] sm:$0xf]
        %v211 = vld [vmem:[%s177 + $0x80] sm:$0xf]
        %v212 = vld [vmem:[%s177 + $0x84] sm:$0xf]
        %v213 = vld [vmem:[%s177 + $0x88] sm:$0xf]
        %v214 = vld [vmem:[%s177 + $0x8c] sm:$0xf]
        %v215 = vld [vmem:[%s177 + $0x90] sm:$0xf]
        %v216 = vld [vmem:[%s177 + $0x94] sm:$0xf]
        %v217 = vld [vmem:[%s177 + $0x98] sm:$0xf]
        %v218 = vld [vmem:[%s177 + $0x9c] sm:$0xf]
        %v219 = vld [vmem:[%s177 + $0xa0] sm:$0xf]
        %v220 = vld [vmem:[%s177 + $0xa4] sm:$0xf]
        %v221 = vld [vmem:[%s177 + $0xa8] sm:$0xf]
        %v222 = vld [vmem:[%s177 + $0xac] sm:$0xf]
        %v223 = vld [vmem:[%s177 + $0xb0] sm:$0xf]
        %v224 = vld [vmem:[%s177 + $0xb4] sm:$0xf]
        %v225 = vld [vmem:[%s177 + $0xb8] sm:$0xf]
        %v226 = vld [vmem:[%s177 + $0xbc] sm:$0xf]
        %v259 = vunpack.c.l.b16 %v179
        %v260 = vunpack.c.l.b16 %v180
        %v261 = vunpack.c.l.b16 %v181
        %v262 = vunpack.c.l.b16 %v182
        %v263 = vunpack.c.l.b16 %v183
        %v264 = vunpack.c.l.b16 %v184
        %v265 = vunpack.c.l.b16 %v185
        %v266 = vunpack.c.l.b16 %v186
        %v267 = vunpack.c.l.b16 %v187
        %v268 = vunpack.c.l.b16 %v188
        %v269 = vunpack.c.l.b16 %v189
        %v270 = vunpack.c.l.b16 %v190
        %v271 = vunpack.c.l.b16 %v191
        %v272 = vunpack.c.l.b16 %v192
        %v273 = vunpack.c.l.b16 %v193
        %v274 = vunpack.c.l.b16 %v194
        %v275 = vunpack.c.l.b16 %v195
        %v276 = vunpack.c.l.b16 %v196
        %v277 = vunpack.c.l.b16 %v197
        %v278 = vunpack.c.l.b16 %v198
        %v279 = vunpack.c.l.b16 %v199
        %v280 = vunpack.c.l.b16 %v200
        %v281 = vunpack.c.l.b16 %v201
        %v282 = vunpack.c.l.b16 %v202
        %v283 = vunpack.c.l.b16 %v203
        %v284 = vunpack.c.l.b16 %v204
        %v285 = vunpack.c.l.b16 %v205
        %v286 = vunpack.c.l.b16 %v206
        %v287 = vunpack.c.l.b16 %v207
        %v288 = vunpack.c.l.b16 %v208
        %v289 = vunpack.c.l.b16 %v209
        %v290 = vunpack.c.l.b16 %v210
        %v291 = vpack.c.b16 %v260, %v259
        %v292 = vpack.c.b16 %v262, %v261
        %v293 = vpack.c.b16 %v264, %v263
        %v294 = vpack.c.b16 %v266, %v265
        %v295 = vpack.c.b16 %v268, %v267
        %v296 = vpack.c.b16 %v270, %v269
        %v297 = vpack.c.b16 %v272, %v271
        %v298 = vpack.c.b16 %v274, %v273
        %v299 = vpack.c.b16 %v276, %v275
        %v300 = vpack.c.b16 %v278, %v277
        %v301 = vpack.c.b16 %v280, %v279
        %v302 = vpack.c.b16 %v282, %v281
        %v303 = vpack.c.b16 %v284, %v283
        %v304 = vpack.c.b16 %v286, %v285
        %v305 = vpack.c.b16 %v288, %v287
        %v306 = vpack.c.b16 %v290, %v289
        %v309 = vunpack.c.l.b16 %v211
        %v310 = vunpack.c.l.b16 %v212
        %v311 = vpack.c.b16 %v310, %v309
        %312 = vrot.lane.b32.xlu0 %v292, 4
        %v313 = vpop.permute.xlu0 %312
        %314 = vrot.lane.b32.xlu0 %v293, 4
        %v315 = vpop.permute.xlu0 %314
        %316 = vrot.lane.b32.xlu0 %v294, 4
        %v317 = vpop.permute.xlu0 %316
        %318 = vrot.lane.b32.xlu0 %v295, 4
        %v319 = vpop.permute.xlu0 %318
        %320 = vrot.lane.b32.xlu0 %v296, 4
        %v321 = vpop.permute.xlu0 %320
        %322 = vrot.lane.b32.xlu0 %v297, 4
        %v323 = vpop.permute.xlu0 %322
        %324 = vrot.lane.b32.xlu0 %v298, 4
        %v325 = vpop.permute.xlu0 %324
        %326 = vrot.lane.b32.xlu0 %v299, 4
        %v327 = vpop.permute.xlu0 %326
        %328 = vrot.lane.b32.xlu0 %v300, 4
        %v329 = vpop.permute.xlu0 %328
        %330 = vrot.lane.b32.xlu0 %v301, 4
        %v331 = vpop.permute.xlu0 %330
        %332 = vrot.lane.b32.xlu0 %v302, 4
        %v333 = vpop.permute.xlu0 %332
        %334 = vrot.lane.b32.xlu0 %v303, 4
        %v335 = vpop.permute.xlu0 %334
        %336 = vrot.lane.b32.xlu0 %v304, 4
        %v337 = vpop.permute.xlu0 %336
        %338 = vrot.lane.b32.xlu0 %v305, 4
        %v339 = vpop.permute.xlu0 %338
        %340 = vrot.lane.b32.xlu0 %v306, 4
        %v341 = vpop.permute.xlu0 %340
        %342 = vrot.lane.b32.xlu0 %v311, 4
        %v343 = vpop.permute.xlu0 %342
        %v346 = vunpack.c.l.b16 %v213
        %v347 = vunpack.c.l.b16 %v214
        %v348 = vpack.c.b16 %v347, %v346
        %349 = vrot.lane.b32.xlu0 %v293, 8
        %v350 = vpop.permute.xlu0 %349
        %351 = vrot.lane.b32.xlu0 %v294, 8
        %v352 = vpop.permute.xlu0 %351
        %353 = vrot.lane.b32.xlu0 %v295, 8
        %v354 = vpop.permute.xlu0 %353
        %355 = vrot.lane.b32.xlu0 %v296, 8
        %v356 = vpop.permute.xlu0 %355
        %357 = vrot.lane.b32.xlu0 %v297, 8
        %v358 = vpop.permute.xlu0 %357
        %359 = vrot.lane.b32.xlu0 %v298, 8
        %v360 = vpop.permute.xlu0 %359
        %361 = vrot.lane.b32.xlu0 %v299, 8
        %v362 = vpop.permute.xlu0 %361
        %363 = vrot.lane.b32.xlu0 %v300, 8
        %v364 = vpop.permute.xlu0 %363
        %365 = vrot.lane.b32.xlu0 %v301, 8
        %v366 = vpop.permute.xlu0 %365
        %367 = vrot.lane.b32.xlu0 %v302, 8
        %v368 = vpop.permute.xlu0 %367
        %369 = vrot.lane.b32.xlu0 %v303, 8
        %v370 = vpop.permute.xlu0 %369
        %371 = vrot.lane.b32.xlu0 %v304, 8
        %v372 = vpop.permute.xlu0 %371
        %373 = vrot.lane.b32.xlu0 %v305, 8
        %v374 = vpop.permute.xlu0 %373
        %375 = vrot.lane.b32.xlu0 %v306, 8
        %v376 = vpop.permute.xlu0 %375
        %377 = vrot.lane.b32.xlu0 %v311, 8
        %v378 = vpop.permute.xlu0 %377
        %379 = vrot.lane.b32.xlu0 %v348, 8
        %v380 = vpop.permute.xlu0 %379
        %v383 = vunpack.c.l.b16 %v215
        %v384 = vunpack.c.l.b16 %v216
        %v385 = vpack.c.b16 %v384, %v383
        %386 = vrot.lane.b32.xlu0 %v294, 12
        %v387 = vpop.permute.xlu0 %386
        %388 = vrot.lane.b32.xlu0 %v295, 12
        %v389 = vpop.permute.xlu0 %388
        %390 = vrot.lane.b32.xlu0 %v296, 12
        %v391 = vpop.permute.xlu0 %390
        %392 = vrot.lane.b32.xlu0 %v297, 12
        %v393 = vpop.permute.xlu0 %392
        %394 = vrot.lane.b32.xlu0 %v298, 12
        %v395 = vpop.permute.xlu0 %394
        %396 = vrot.lane.b32.xlu0 %v299, 12
        %v397 = vpop.permute.xlu0 %396
        %398 = vrot.lane.b32.xlu0 %v300, 12
        %v399 = vpop.permute.xlu0 %398
        %400 = vrot.lane.b32.xlu0 %v301, 12
        %v401 = vpop.permute.xlu0 %400
        %402 = vrot.lane.b32.xlu0 %v302, 12
        %v403 = vpop.permute.xlu0 %402
        %404 = vrot.lane.b32.xlu0 %v303, 12
        %v405 = vpop.permute.xlu0 %404
        %406 = vrot.lane.b32.xlu0 %v304, 12
        %v407 = vpop.permute.xlu0 %406
        %408 = vrot.lane.b32.xlu0 %v305, 12
        %v409 = vpop.permute.xlu0 %408
        %410 = vrot.lane.b32.xlu0 %v306, 12
        %v411 = vpop.permute.xlu0 %410
        %412 = vrot.lane.b32.xlu0 %v311, 12
        %v413 = vpop.permute.xlu0 %412
        %414 = vrot.lane.b32.xlu0 %v348, 12
        %v415 = vpop.permute.xlu0 %414
        %416 = vrot.lane.b32.xlu0 %v385, 12
        %v417 = vpop.permute.xlu0 %416
        %v420 = vunpack.c.l.b16 %v217
        %v421 = vunpack.c.l.b16 %v218
        %v422 = vpack.c.b16 %v421, %v420
        %423 = vrot.lane.b32.xlu0 %v295, 16
        %v424 = vpop.permute.xlu0 %423
        %425 = vrot.lane.b32.xlu0 %v296, 16
        %v426 = vpop.permute.xlu0 %425
        %427 = vrot.lane.b32.xlu0 %v297, 16
        %v428 = vpop.permute.xlu0 %427
        %429 = vrot.lane.b32.xlu0 %v298, 16
        %v430 = vpop.permute.xlu0 %429
        %431 = vrot.lane.b32.xlu0 %v299, 16
        %v432 = vpop.permute.xlu0 %431
        %433 = vrot.lane.b32.xlu0 %v300, 16
        %v434 = vpop.permute.xlu0 %433
        %435 = vrot.lane.b32.xlu0 %v301, 16
        %v436 = vpop.permute.xlu0 %435
        %437 = vrot.lane.b32.xlu0 %v302, 16
        %v438 = vpop.permute.xlu0 %437
        %439 = vrot.lane.b32.xlu0 %v303, 16
        %v440 = vpop.permute.xlu0 %439
        %441 = vrot.lane.b32.xlu0 %v304, 16
        %v442 = vpop.permute.xlu0 %441
        %443 = vrot.lane.b32.xlu0 %v305, 16
        %v444 = vpop.permute.xlu0 %443
        %445 = vrot.lane.b32.xlu0 %v306, 16
        %v446 = vpop.permute.xlu0 %445
        %447 = vrot.lane.b32.xlu0 %v311, 16
        %v448 = vpop.permute.xlu0 %447
        %449 = vrot.lane.b32.xlu0 %v348, 16
        %v450 = vpop.permute.xlu0 %449
        %451 = vrot.lane.b32.xlu0 %v385, 16
        %v452 = vpop.permute.xlu0 %451
        %453 = vrot.lane.b32.xlu0 %v422, 16
        %v454 = vpop.permute.xlu0 %453
        %v457 = vunpack.c.l.b16 %v219
        %v458 = vunpack.c.l.b16 %v220
        %v459 = vpack.c.b16 %v458, %v457
        %460 = vrot.lane.b32.xlu0 %v296, 20
        %v461 = vpop.permute.xlu0 %460
        %462 = vrot.lane.b32.xlu0 %v297, 20
        %v463 = vpop.permute.xlu0 %462
        %464 = vrot.lane.b32.xlu0 %v298, 20
        %v465 = vpop.permute.xlu0 %464
        %466 = vrot.lane.b32.xlu0 %v299, 20
        %v467 = vpop.permute.xlu0 %466
        %468 = vrot.lane.b32.xlu0 %v300, 20
        %v469 = vpop.permute.xlu0 %468
        %470 = vrot.lane.b32.xlu0 %v301, 20
        %v471 = vpop.permute.xlu0 %470
        %472 = vrot.lane.b32.xlu0 %v302, 20
        %v473 = vpop.permute.xlu0 %472
        %474 = vrot.lane.b32.xlu0 %v303, 20
        %v475 = vpop.permute.xlu0 %474
        %476 = vrot.lane.b32.xlu0 %v304, 20
        %v477 = vpop.permute.xlu0 %476
        %478 = vrot.lane.b32.xlu0 %v305, 20
        %v479 = vpop.permute.xlu0 %478
        %480 = vrot.lane.b32.xlu0 %v306, 20
        %v481 = vpop.permute.xlu0 %480
        %482 = vrot.lane.b32.xlu0 %v311, 20
        %v483 = vpop.permute.xlu0 %482
        %484 = vrot.lane.b32.xlu0 %v348, 20
        %v485 = vpop.permute.xlu0 %484
        %486 = vrot.lane.b32.xlu0 %v385, 20
        %v487 = vpop.permute.xlu0 %486
        %488 = vrot.lane.b32.xlu0 %v422, 20
        %v489 = vpop.permute.xlu0 %488
        %490 = vrot.lane.b32.xlu0 %v459, 20
        %v491 = vpop.permute.xlu0 %490
        %v494 = vunpack.c.l.b16 %v221
        %v495 = vunpack.c.l.b16 %v222
        %v496 = vpack.c.b16 %v495, %v494
        %497 = vrot.lane.b32.xlu0 %v297, 24
        %v498 = vpop.permute.xlu0 %497
        %499 = vrot.lane.b32.xlu0 %v298, 24
        %v500 = vpop.permute.xlu0 %499
        %501 = vrot.lane.b32.xlu0 %v299, 24
        %v502 = vpop.permute.xlu0 %501
        %503 = vrot.lane.b32.xlu0 %v300, 24
        %v504 = vpop.permute.xlu0 %503
        %505 = vrot.lane.b32.xlu0 %v301, 24
        %v506 = vpop.permute.xlu0 %505
        %507 = vrot.lane.b32.xlu0 %v302, 24
        %v508 = vpop.permute.xlu0 %507
        %509 = vrot.lane.b32.xlu0 %v303, 24
        %v510 = vpop.permute.xlu0 %509
        %511 = vrot.lane.b32.xlu0 %v304, 24
        %v512 = vpop.permute.xlu0 %511
        %513 = vrot.lane.b32.xlu0 %v305, 24
        %v514 = vpop.permute.xlu0 %513
        %515 = vrot.lane.b32.xlu0 %v306, 24
        %v516 = vpop.permute.xlu0 %515
        %517 = vrot.lane.b32.xlu0 %v311, 24
        %v518 = vpop.permute.xlu0 %517
        %519 = vrot.lane.b32.xlu0 %v348, 24
        %v520 = vpop.permute.xlu0 %519
        %521 = vrot.lane.b32.xlu0 %v385, 24
        %v522 = vpop.permute.xlu0 %521
        %523 = vrot.lane.b32.xlu0 %v422, 24
        %v524 = vpop.permute.xlu0 %523
        %525 = vrot.lane.b32.xlu0 %v459, 24
        %v526 = vpop.permute.xlu0 %525
        %527 = vrot.lane.b32.xlu0 %v496, 24
        %v528 = vpop.permute.xlu0 %527
        %v531 = vunpack.c.l.b16 %v223
        %v532 = vunpack.c.l.b16 %v224
        %v533 = vpack.c.b16 %v532, %v531
        %534 = vrot.lane.b32.xlu0 %v298, 28
        %v535 = vpop.permute.xlu0 %534
        %536 = vrot.lane.b32.xlu0 %v299, 28
        %v537 = vpop.permute.xlu0 %536
        %538 = vrot.lane.b32.xlu0 %v300, 28
        %v539 = vpop.permute.xlu0 %538
        %540 = vrot.lane.b32.xlu0 %v301, 28
        %v541 = vpop.permute.xlu0 %540
        %542 = vrot.lane.b32.xlu0 %v302, 28
        %v543 = vpop.permute.xlu0 %542
        %544 = vrot.lane.b32.xlu0 %v303, 28
        %v545 = vpop.permute.xlu0 %544
        %546 = vrot.lane.b32.xlu0 %v304, 28
        %v547 = vpop.permute.xlu0 %546
        %548 = vrot.lane.b32.xlu0 %v305, 28
        %v549 = vpop.permute.xlu0 %548
        %550 = vrot.lane.b32.xlu0 %v306, 28
        %v551 = vpop.permute.xlu0 %550
        %552 = vrot.lane.b32.xlu0 %v311, 28
        %v553 = vpop.permute.xlu0 %552
        %554 = vrot.lane.b32.xlu0 %v348, 28
        %v555 = vpop.permute.xlu0 %554
        %556 = vrot.lane.b32.xlu0 %v385, 28
        %v557 = vpop.permute.xlu0 %556
        %558 = vrot.lane.b32.xlu0 %v422, 28
        %v559 = vpop.permute.xlu0 %558
        %560 = vrot.lane.b32.xlu0 %v459, 28
        %v561 = vpop.permute.xlu0 %560
        %562 = vrot.lane.b32.xlu0 %v496, 28
        %v563 = vpop.permute.xlu0 %562
        %564 = vrot.lane.b32.xlu0 %v533, 28
        %v565 = vpop.permute.xlu0 %564
        %v568 = vunpack.c.l.b16 %v225
        %v569 = vunpack.c.l.b16 %v226
        %v570 = vpack.c.b16 %v569, %v568
        %571 = vrot.lane.b32.xlu0 %v299, 32
        %v572 = vpop.permute.xlu0 %571
        %573 = vrot.lane.b32.xlu0 %v300, 32
        %v574 = vpop.permute.xlu0 %573
        %575 = vrot.lane.b32.xlu0 %v301, 32
        %v576 = vpop.permute.xlu0 %575
        %577 = vrot.lane.b32.xlu0 %v302, 32
        %v578 = vpop.permute.xlu0 %577
        %579 = vrot.lane.b32.xlu0 %v303, 32
        %v580 = vpop.permute.xlu0 %579
        %581 = vrot.lane.b32.xlu0 %v304, 32
        %v582 = vpop.permute.xlu0 %581
        %583 = vrot.lane.b32.xlu0 %v305, 32
        %v584 = vpop.permute.xlu0 %583
        %585 = vrot.lane.b32.xlu0 %v306, 32
        %v586 = vpop.permute.xlu0 %585
        %587 = vrot.lane.b32.xlu0 %v311, 32
        %v588 = vpop.permute.xlu0 %587
        %589 = vrot.lane.b32.xlu0 %v348, 32
        %v590 = vpop.permute.xlu0 %589
        %591 = vrot.lane.b32.xlu0 %v385, 32
        %v592 = vpop.permute.xlu0 %591
        %593 = vrot.lane.b32.xlu0 %v422, 32
        %v594 = vpop.permute.xlu0 %593
        %595 = vrot.lane.b32.xlu0 %v459, 32
        %v596 = vpop.permute.xlu0 %595
        %597 = vrot.lane.b32.xlu0 %v496, 32
        %v598 = vpop.permute.xlu0 %597
        %599 = vrot.lane.b32.xlu0 %v533, 32
        %v600 = vpop.permute.xlu0 %599
        %601 = vrot.lane.b32.xlu0 %v570, 32
        %v602 = vpop.permute.xlu0 %601
        %vm603 = vcmask 31744
        %v606 = vsel %vm603, %v291, %v313
        %v609 = vsel %vm603, %v292, %v315
        %v612 = vsel %vm603, %v293, %v317
        %v615 = vsel %vm603, %v294, %v319
        %v618 = vsel %vm603, %v295, %v321
        %v621 = vsel %vm603, %v296, %v323
        %v624 = vsel %vm603, %v297, %v325
        %v627 = vsel %vm603, %v298, %v327
        %v630 = vsel %vm603, %v299, %v329
        %v633 = vsel %vm603, %v300, %v331
        %v636 = vsel %vm603, %v301, %v333
        %v639 = vsel %vm603, %v302, %v335
        %v642 = vsel %vm603, %v303, %v337
        %v645 = vsel %vm603, %v304, %v339
        %v648 = vsel %vm603, %v305, %v341
        %v651 = vsel %vm603, %v306, %v343
        %vm652 = vcmask 64512
        %v654 = vsel %vm652, %v606, %v350
        %v656 = vsel %vm652, %v609, %v352
        %v658 = vsel %vm652, %v612, %v354
        %v660 = vsel %vm652, %v615, %v356
        %v662 = vsel %vm652, %v618, %v358
        %v664 = vsel %vm652, %v621, %v360
        %v666 = vsel %vm652, %v624, %v362
        %v668 = vsel %vm652, %v627, %v364
        %v670 = vsel %vm652, %v630, %v366
        %v672 = vsel %vm652, %v633, %v368
        %v674 = vsel %vm652, %v636, %v370
        %v676 = vsel %vm652, %v639, %v372
        %v678 = vsel %vm652, %v642, %v374
        %v680 = vsel %vm652, %v645, %v376
        %v682 = vsel %vm652, %v648, %v378
        %v684 = vsel %vm652, %v651, %v380
        %vm685 = vcmask 97280
        %v687 = vsel %vm685, %v654, %v387
        %v689 = vsel %vm685, %v656, %v389
        %v691 = vsel %vm685, %v658, %v391
        %v693 = vsel %vm685, %v660, %v393
        %v695 = vsel %vm685, %v662, %v395
        %v697 = vsel %vm685, %v664, %v397
        %v699 = vsel %vm685, %v666, %v399
        %v701 = vsel %vm685, %v668, %v401
        %v703 = vsel %vm685, %v670, %v403
        %v705 = vsel %vm685, %v672, %v405
        %v707 = vsel %vm685, %v674, %v407
        %v709 = vsel %vm685, %v676, %v409
        %v711 = vsel %vm685, %v678, %v411
        %v713 = vsel %vm685, %v680, %v413
        %v715 = vsel %vm685, %v682, %v415
        %v717 = vsel %vm685, %v684, %v417
        %vm718 = vcmask 130048
        %v720 = vsel %vm718, %v687, %v424
        %v722 = vsel %vm718, %v689, %v426
        %v724 = vsel %vm718, %v691, %v428
        %v726 = vsel %vm718, %v693, %v430
        %v728 = vsel %vm718, %v695, %v432
        %v730 = vsel %vm718, %v697, %v434
        %v732 = vsel %vm718, %v699, %v436
        %v734 = vsel %vm718, %v701, %v438
        %v736 = vsel %vm718, %v703, %v440
        %v738 = vsel %vm718, %v705, %v442
        %v740 = vsel %vm718, %v707, %v444
        %v742 = vsel %vm718, %v709, %v446
        %v744 = vsel %vm718, %v711, %v448
        %v746 = vsel %vm718, %v713, %v450
        %v748 = vsel %vm718, %v715, %v452
        %v750 = vsel %vm718, %v717, %v454
        %vm751 = vcmask 162816
        %v753 = vsel %vm751, %v720, %v461
        %v755 = vsel %vm751, %v722, %v463
        %v757 = vsel %vm751, %v724, %v465
        %v759 = vsel %vm751, %v726, %v467
        %v761 = vsel %vm751, %v728, %v469
        %v763 = vsel %vm751, %v730, %v471
        %v765 = vsel %vm751, %v732, %v473
        %v767 = vsel %vm751, %v734, %v475
        %v769 = vsel %vm751, %v736, %v477
        %v771 = vsel %vm751, %v738, %v479
        %v773 = vsel %vm751, %v740, %v481
        %v775 = vsel %vm751, %v742, %v483
        %v777 = vsel %vm751, %v744, %v485
        %v779 = vsel %vm751, %v746, %v487
        %v781 = vsel %vm751, %v748, %v489
        %v783 = vsel %vm751, %v750, %v491
        %vm784 = vcmask 195584
        %v786 = vsel %vm784, %v753, %v498
        %v788 = vsel %vm784, %v755, %v500
        %v790 = vsel %vm784, %v757, %v502
        %v792 = vsel %vm784, %v759, %v504
        %v794 = vsel %vm784, %v761, %v506
        %v796 = vsel %vm784, %v763, %v508
        %v798 = vsel %vm784, %v765, %v510
        %v800 = vsel %vm784, %v767, %v512
        %v802 = vsel %vm784, %v769, %v514
        %v804 = vsel %vm784, %v771, %v516
        %v806 = vsel %vm784, %v773, %v518
        %v808 = vsel %vm784, %v775, %v520
        %v810 = vsel %vm784, %v777, %v522
        %v812 = vsel %vm784, %v779, %v524
        %v814 = vsel %vm784, %v781, %v526
        %v816 = vsel %vm784, %v783, %v528
        %vm817 = vcmask 228352
        %v819 = vsel %vm817, %v786, %v535
        %v821 = vsel %vm817, %v788, %v537
        %v823 = vsel %vm817, %v790, %v539
        %v825 = vsel %vm817, %v792, %v541
        %v827 = vsel %vm817, %v794, %v543
        %v829 = vsel %vm817, %v796, %v545
        %v831 = vsel %vm817, %v798, %v547
        %v833 = vsel %vm817, %v800, %v549
        %v835 = vsel %vm817, %v802, %v551
        %v837 = vsel %vm817, %v804, %v553
        %v839 = vsel %vm817, %v806, %v555
        %v841 = vsel %vm817, %v808, %v557
        %v843 = vsel %vm817, %v810, %v559
        %v845 = vsel %vm817, %v812, %v561
        %v847 = vsel %vm817, %v814, %v563
        %v849 = vsel %vm817, %v816, %v565
        %vm850 = vcmask 261120
        %v852 = vsel %vm850, %v819, %v572
        %v854 = vsel %vm850, %v821, %v574
        %v856 = vsel %vm850, %v823, %v576
        %v858 = vsel %vm850, %v825, %v578
        %v860 = vsel %vm850, %v827, %v580
        %v862 = vsel %vm850, %v829, %v582
        %v864 = vsel %vm850, %v831, %v584
        %v866 = vsel %vm850, %v833, %v586
        %v868 = vsel %vm850, %v835, %v588
        %v870 = vsel %vm850, %v837, %v590
        %v872 = vsel %vm850, %v839, %v592
        %v874 = vsel %vm850, %v841, %v594
        %v876 = vsel %vm850, %v843, %v596
        %v878 = vsel %vm850, %v845, %v598
        %v880 = vsel %vm850, %v847, %v600
        %v882 = vsel %vm850, %v849, %v602
        %v883 = vld [vmem:[%s1] sm:$0xf]
        %v884 = vld [vmem:[%s1 + $0x4] sm:$0xf]
        %v885 = vld [vmem:[%s1 + $0x8] sm:$0xf]
        %v886 = vld [vmem:[%s1 + $0xc] sm:$0xf]
        %v887 = vld [vmem:[%s1 + $0x10] sm:$0x3]
        %v893 = vunpack.c.l.b16 %v883
        %v894 = vunpack.c.l.b16 %v884
        %v895 = vunpack.c.l.b16 %v885
        %v896 = vunpack.c.l.b16 %v886
        %v897 = vunpack.c.l.b16 %v887
        %v898 = vpack.c.b16 %v894, %v893
        %v899 = vpack.c.b16 %v896, %v895
        %v900 = vpack.c.b16 %v897, %v897
        %vm903 = vcmask 293888
        %v904 = vsel %vm903, %v852, 0
        %v906 = vsel %vm903, %v854, 0
        %v908 = vsel %vm903, %v856, 0
        %v910 = vsel %vm903, %v858, 0
        %v912 = vsel %vm903, %v860, 0
        %v914 = vsel %vm903, %v862, 0
        %v916 = vsel %vm903, %v864, 0
        %v918 = vsel %vm903, %v866, 0
        %v920 = vsel %vm903, %v868, 0
        %v922 = vsel %vm903, %v870, 0
        %v924 = vsel %vm903, %v872, 0
        %v926 = vsel %vm903, %v874, 0
        %v928 = vsel %vm903, %v876, 0
        %v930 = vsel %vm903, %v878, 0
        %v932 = vsel %vm903, %v880, 0
        %v934 = vsel %vm903, %v882, 0
        %vm936 = vcmask 1041408
        %v938 = vsel %vm936, %v900, 0
        %940 = vmatprep.subr.bf16.mxu0 0
        %941 = vmatpush1.bf16.msra.mxu0 %v898
        %942 = vmatprep.subr.bf16.mxu0 0
        %943 = vmatpush1.bf16.msra.mxu0 %v899
        %944 = vmatprep.subr.bf16.mxu0 0
        %945 = vmatpush1.bf16.msra.mxu0 %v938
        %946 = vmatprep.subr.bf16.mxu0 0
        %947 = vmatpush1.bf16.msra.mxu0 0
        %948 = vmatprep.subr.bf16.mxu0 0
        %949 = vmatpush1.bf16.msra.mxu0 0
        %950 = vmatprep.subr.bf16.mxu0 0
        %951 = vmatpush1.bf16.msra.mxu0 0
        %952 = vmatprep.subr.bf16.mxu0 0
        %953 = vmatpush1.bf16.msra.mxu0 0
        %954 = vmatprep.subr.bf16.mxu0 0
        %955 = vmatpush1.bf16.msra.mxu0 0
        %956 = vmatprep.subr.bf16.mxu0 0
        %957 = vmatpush1.bf16.msra.mxu0 0
        %958 = vmatprep.subr.bf16.mxu0 0
        %959 = vmatpush1.bf16.msra.mxu0 0
        %960 = vmatprep.subr.bf16.mxu0 0
        %961 = vmatpush1.bf16.msra.mxu0 0
        %962 = vmatprep.subr.bf16.mxu0 0
        %963 = vmatpush1.bf16.msra.mxu0 0
        %964 = vmatprep.subr.bf16.mxu0 0
        %965 = vmatpush1.bf16.msra.mxu0 0
        %966 = vmatprep.subr.bf16.mxu0 0
        %967 = vmatpush1.bf16.msra.mxu0 0
        %968 = vmatprep.subr.bf16.mxu0 0
        %969 = vmatpush1.bf16.msra.mxu0 0
        %970 = vmatprep.subr.bf16.mxu0 0
        %971 = vmatpush1.bf16.msra.mxu0 0
        %972 = vmatprep.mubr.bf16.mxu0 0
        %973 = vmatmul.mubr.bf16.gmra.mrb[0].mxu0 %v904
        %v974 = vpop.f32.mrb[0].mxu0
        %v975 = vadd.f32 0.0, %v974
        %v976 = vpop.f32.mrb[0].mxu0
        %v977 = vpop.f32.mrb[0].mxu0
        %v978 = vadd.f32 0.0, %v977
        %v979 = vpop.f32.mrb[0].mxu0
        %980 = vmatprep.mubr.bf16.mxu0 0
        %981 = vmatmul.mubr.bf16.gmra.mrb[0].mxu0 %v906
        %v982 = vpop.f32.mrb[0].mxu0
        %v983 = vadd.f32 0.0, %v982
        %v984 = vpop.f32.mrb[0].mxu0
        %v985 = vpop.f32.mrb[0].mxu0
        %v986 = vadd.f32 0.0, %v985
        %v987 = vpop.f32.mrb[0].mxu0
        %988 = vmatprep.mubr.bf16.mxu0 0
        %989 = vmatmul.mubr.bf16.gmra.mrb[0].mxu0 %v908
        %v990 = vpop.f32.mrb[0].mxu0
        %v991 = vadd.f32 0.0, %v990
        %v992 = vpop.f32.mrb[0].mxu0
        %v993 = vpop.f32.mrb[0].mxu0
        %v994 = vadd.f32 0.0, %v993
        %v995 = vpop.f32.mrb[0].mxu0
        %996 = vmatprep.mubr.bf16.mxu0 0
        %997 = vmatmul.mubr.bf16.gmra.mrb[0].mxu0 %v910
        %v998 = vpop.f32.mrb[0].mxu0
        %v999 = vadd.f32 0.0, %v998
        %v1000 = vpop.f32.mrb[0].mxu0
        %v1001 = vpop.f32.mrb[0].mxu0
        %v1002 = vadd.f32 0.0, %v1001
        %v1003 = vpop.f32.mrb[0].mxu0
        %1004 = vmatprep.mubr.bf16.mxu0 0
        %1005 = vmatmul.mubr.bf16.gmra.mrb[0].mxu0 %v912
        %v1006 = vpop.f32.mrb[0].mxu0
        %v1007 = vadd.f32 0.0, %v1006
        %v1008 = vpop.f32.mrb[0].mxu0
        %v1009 = vpop.f32.mrb[0].mxu0
        %v1010 = vadd.f32 0.0, %v1009
        %v1011 = vpop.f32.mrb[0].mxu0
        %1012 = vmatprep.mubr.bf16.mxu0 0
        %1013 = vmatmul.mubr.bf16.gmra.mrb[0].mxu0 %v914
        %v1014 = vpop.f32.mrb[0].mxu0
        %v1015 = vadd.f32 0.0, %v1014
        %v1016 = vpop.f32.mrb[0].mxu0
        %v1017 = vpop.f32.mrb[0].mxu0
        %v1018 = vadd.f32 0.0, %v1017
        %v1019 = vpop.f32.mrb[0].mxu0
        %1020 = vmatprep.mubr.bf16.mxu0 0
        %1021 = vmatmul.mubr.bf16.gmra.mrb[0].mxu0 %v916
        %v1022 = vpop.f32.mrb[0].mxu0
        %v1023 = vadd.f32 0.0, %v1022
        %v1024 = vpop.f32.mrb[0].mxu0
        %v1025 = vpop.f32.mrb[0].mxu0
        %v1026 = vadd.f32 0.0, %v1025
        %v1027 = vpop.f32.mrb[0].mxu0
        %1028 = vmatprep.mubr.bf16.mxu0 0
        %1029 = vmatmul.mubr.bf16.gmra.mrb[0].mxu0 %v918
        %v1030 = vpop.f32.mrb[0].mxu0
        %v1031 = vadd.f32 0.0, %v1030
        %v1032 = vpop.f32.mrb[0].mxu0
        %v1033 = vpop.f32.mrb[0].mxu0
        %v1034 = vadd.f32 0.0, %v1033
        %v1035 = vpop.f32.mrb[0].mxu0
        %1036 = vmatprep.mubr.bf16.mxu0 0
        %1037 = vmatmul.mubr.bf16.gmra.mrb[0].mxu0 %v920
        %v1038 = vpop.f32.mrb[0].mxu0
        %v1039 = vadd.f32 0.0, %v1038
        %v1040 = vpop.f32.mrb[0].mxu0
        %v1041 = vpop.f32.mrb[0].mxu0
        %v1042 = vadd.f32 0.0, %v1041
        %v1043 = vpop.f32.mrb[0].mxu0
        %1044 = vmatprep.mubr.bf16.mxu0 0
        %1045 = vmatmul.mubr.bf16.gmra.mrb[0].mxu0 %v922
        %v1046 = vpop.f32.mrb[0].mxu0
        %v1047 = vadd.f32 0.0, %v1046
        %v1048 = vpop.f32.mrb[0].mxu0
        %v1049 = vpop.f32.mrb[0].mxu0
        %v1050 = vadd.f32 0.0, %v1049
        %v1051 = vpop.f32.mrb[0].mxu0
        %1052 = vmatprep.mubr.bf16.mxu0 0
        %1053 = vmatmul.mubr.bf16.gmra.mrb[0].mxu0 %v924
        %v1054 = vpop.f32.mrb[0].mxu0
        %v1055 = vadd.f32 0.0, %v1054
        %v1056 = vpop.f32.mrb[0].mxu0
        %v1057 = vpop.f32.mrb[0].mxu0
        %v1058 = vadd.f32 0.0, %v1057
        %v1059 = vpop.f32.mrb[0].mxu0
        %1060 = vmatprep.mubr.bf16.mxu0 0
        %1061 = vmatmul.mubr.bf16.gmra.mrb[0].mxu0 %v926
        %v1062 = vpop.f32.mrb[0].mxu0
        %v1063 = vadd.f32 0.0, %v1062
        %v1064 = vpop.f32.mrb[0].mxu0
        %v1065 = vpop.f32.mrb[0].mxu0
        %v1066 = vadd.f32 0.0, %v1065
        %v1067 = vpop.f32.mrb[0].mxu0
        %1068 = vmatprep.mubr.bf16.mxu0 0
        %1069 = vmatmul.mubr.bf16.gmra.mrb[0].mxu0 %v928
        %v1070 = vpop.f32.mrb[0].mxu0
        %v1071 = vadd.f32 0.0, %v1070
        %v1072 = vpop.f32.mrb[0].mxu0
        %v1073 = vpop.f32.mrb[0].mxu0
        %v1074 = vadd.f32 0.0, %v1073
        %v1075 = vpop.f32.mrb[0].mxu0
        %1076 = vmatprep.mubr.bf16.mxu0 0
        %1077 = vmatmul.mubr.bf16.gmra.mrb[0].mxu0 %v930
        %v1078 = vpop.f32.mrb[0].mxu0
        %v1079 = vadd.f32 0.0, %v1078
        %v1080 = vpop.f32.mrb[0].mxu0
        %v1081 = vpop.f32.mrb[0].mxu0
        %v1082 = vadd.f32 0.0, %v1081
        %v1083 = vpop.f32.mrb[0].mxu0
        %1084 = vmatprep.mubr.bf16.mxu0 0
        %1085 = vmatmul.mubr.bf16.gmra.mrb[0].mxu0 %v932
        %v1086 = vpop.f32.mrb[0].mxu0
        %v1087 = vadd.f32 0.0, %v1086
        %v1088 = vpop.f32.mrb[0].mxu0
        %v1089 = vpop.f32.mrb[0].mxu0
        %v1090 = vadd.f32 0.0, %v1089
        %v1091 = vpop.f32.mrb[0].mxu0
        %1092 = vmatprep.mubr.bf16.mxu0 0
        %1093 = vmatmul.mubr.bf16.gmra.mrb[0].mxu0 %v934
        %v1094 = vpop.f32.mrb[0].mxu0
        %v1095 = vadd.f32 0.0, %v1094
        %v1096 = vpop.f32.mrb[0].mxu0
        %v1097 = vpop.f32.mrb[0].mxu0
        %v1098 = vadd.f32 0.0, %v1097
        %v1099 = vpop.f32.mrb[0].mxu0
        %1100 = vdwg.mxu0
        %v1101 = vadd.f32 %v975, %v978
        %v1102 = vadd.f32 %v1101, %v983
        %v1103 = vadd.f32 %v1102, %v986
        %v1104 = vadd.f32 %v1103, %v991
        %v1105 = vadd.f32 %v1104, %v994
        %v1106 = vadd.f32 %v1105, %v999
        %v1107 = vadd.f32 %v1106, %v1002
        %v1108 = vadd.f32 %v1107, %v1007
        %v1109 = vadd.f32 %v1108, %v1010
        %v1110 = vadd.f32 %v1109, %v1015
        %v1111 = vadd.f32 %v1110, %v1018
        %v1112 = vadd.f32 %v1111, %v1023
        %v1113 = vadd.f32 %v1112, %v1026
        %v1114 = vadd.f32 %v1113, %v1031
        %v1115 = vadd.f32 %v1114, %v1034
        %v1116 = vadd.f32 %v1115, %v1039
        %v1117 = vadd.f32 %v1116, %v1042
        %v1118 = vadd.f32 %v1117, %v1047
        %v1119 = vadd.f32 %v1118, %v1050
        %v1120 = vadd.f32 %v1119, %v1055
        %v1121 = vadd.f32 %v1120, %v1058
        %v1122 = vadd.f32 %v1121, %v1063
        %v1123 = vadd.f32 %v1122, %v1066
        %v1124 = vadd.f32 %v1123, %v1071
        %v1125 = vadd.f32 %v1124, %v1074
        %v1126 = vadd.f32 %v1125, %v1079
        %v1127 = vadd.f32 %v1126, %v1082
        %v1128 = vadd.f32 %v1127, %v1087
        %v1129 = vadd.f32 %v1128, %v1090
        %v1130 = vadd.f32 %v1129, %v1095
        %v1131 = vadd.f32 %v1130, %v1098
        %v1132 = vrot.slane %v1131, 4
        %v1133 = vadd.f32 %v1131, %v1132
        %v1134 = vrot.slane %v1133, 2
        %v1135 = vadd.f32 %v1133, %v1134
        %v1136 = vrot.slane %v1135, 1
        %v1137 = vadd.f32 %v1135, %v1136
        %1138 = vst [vmem:[%s166] sm:$0x1] %v1137
        %v1139 = vmul.f32 %v975, %v975
        %v1140 = vmul.f32 %v978, %v978
        %v1141 = vmul.f32 %v983, %v983
        %v1142 = vmul.f32 %v986, %v986
        %v1143 = vmul.f32 %v991, %v991
        %v1144 = vmul.f32 %v994, %v994
        %v1145 = vmul.f32 %v999, %v999
        %v1146 = vmul.f32 %v1002, %v1002
        %v1147 = vmul.f32 %v1007, %v1007
        %v1148 = vmul.f32 %v1010, %v1010
        %v1149 = vmul.f32 %v1015, %v1015
        %v1150 = vmul.f32 %v1018, %v1018
        %v1151 = vmul.f32 %v1023, %v1023
        %v1152 = vmul.f32 %v1026, %v1026
        %v1153 = vmul.f32 %v1031, %v1031
        %v1154 = vmul.f32 %v1034, %v1034
        %v1155 = vmul.f32 %v1039, %v1039
        %v1156 = vmul.f32 %v1042, %v1042
        %v1157 = vmul.f32 %v1047, %v1047
        %v1158 = vmul.f32 %v1050, %v1050
        %v1159 = vmul.f32 %v1055, %v1055
        %v1160 = vmul.f32 %v1058, %v1058
        %v1161 = vmul.f32 %v1063, %v1063
        %v1162 = vmul.f32 %v1066, %v1066
        %v1163 = vmul.f32 %v1071, %v1071
        %v1164 = vmul.f32 %v1074, %v1074
        %v1165 = vmul.f32 %v1079, %v1079
        %v1166 = vmul.f32 %v1082, %v1082
        %v1167 = vmul.f32 %v1087, %v1087
        %v1168 = vmul.f32 %v1090, %v1090
        %v1169 = vmul.f32 %v1095, %v1095
        %v1170 = vmul.f32 %v1098, %v1098
        %v1171 = vadd.f32 %v1139, %v1140
        %v1172 = vadd.f32 %v1171, %v1141
        %v1173 = vadd.f32 %v1172, %v1142
        %v1174 = vadd.f32 %v1173, %v1143
        %v1175 = vadd.f32 %v1174, %v1144
        %v1176 = vadd.f32 %v1175, %v1145
        %v1177 = vadd.f32 %v1176, %v1146
        %v1178 = vadd.f32 %v1177, %v1147
        %v1179 = vadd.f32 %v1178, %v1148
        %v1180 = vadd.f32 %v1179, %v1149
        %v1181 = vadd.f32 %v1180, %v1150
        %v1182 = vadd.f32 %v1181, %v1151
        %v1183 = vadd.f32 %v1182, %v1152
        %v1184 = vadd.f32 %v1183, %v1153
        %v1185 = vadd.f32 %v1184, %v1154
        %v1186 = vadd.f32 %v1185, %v1155
        %v1187 = vadd.f32 %v1186, %v1156
        %v1188 = vadd.f32 %v1187, %v1157
        %v1189 = vadd.f32 %v1188, %v1158
        %v1190 = vadd.f32 %v1189, %v1159
        %v1191 = vadd.f32 %v1190, %v1160
        %v1192 = vadd.f32 %v1191, %v1161
        %v1193 = vadd.f32 %v1192, %v1162
        %v1194 = vadd.f32 %v1193, %v1163
        %v1195 = vadd.f32 %v1194, %v1164
        %v1196 = vadd.f32 %v1195, %v1165
        %v1197 = vadd.f32 %v1196, %v1166
        %v1198 = vadd.f32 %v1197, %v1167
        %v1199 = vadd.f32 %v1198, %v1168
        %v1200 = vadd.f32 %v1199, %v1169
        %v1201 = vadd.f32 %v1200, %v1170
        %v1202 = vrot.slane %v1201, 4
        %v1203 = vadd.f32 %v1201, %v1202
        %v1204 = vrot.slane %v1203, 2
        %v1205 = vadd.f32 %v1203, %v1204
        %v1206 = vrot.slane %v1205, 1
        %v1207 = vadd.f32 %v1205, %v1206
        %1208 = vst [vmem:[%s172] sm:$0x1] %v1207
        %s1209 = sand.u32 %s76, 1
        %s1210 = scalar_lea.sflag [#allocation3], %s1209
        %s1211 = sand.u32 %s76, 1
        %s1212 = scalar_lea.vmem [#allocation2], %s1211
        %s1213 = sand.u32 %s102, 1
        %s1214 = scalar_lea.sflag [#allocation5], %s1213
        %s1215 = sand.u32 %s102, 1
        %s1216 = scalar_lea.vmem [#allocation4], %s1215
        // Predicated region
        $region29: #{tpu_custom_call.1} parent=27 // pred_check
          %p1217 = pneg %p86
        $region30: #{tpu_custom_call.1} parent=27 // pred_check_branch
          %1219 = sbr.rel (%p1217) target = $region32
        $region31: #{tpu_custom_call.1} parent=27 // pred_region
          %s1221 = ssub.s32 16, 16
          %1222 = vsyncadd %s1210, %s1221
          %s1223 = smul.addr %s21, 16
          %s1224 = scalar_lea.hbm %s2, %s1223
          %s1226 = sshll.u32 %s1212, 4
          %s1227 = int_to_ptr.vmem [resolvable:$true] %s1226
          %1229 = dma.vmem_to_hbm [thread:$0]  %s1227, 16, %s1224, %s1210
        $region32: #{tpu_custom_call.1} parent=27 // pred_fallthru
          _
        // Predicated region
        $region33: #{tpu_custom_call.1} parent=27 // pred_check
          %p1230 = pneg %p112
        $region34: #{tpu_custom_call.1} parent=27 // pred_check_branch
          %1232 = sbr.rel (%p1230) target = $region36
        $region35: #{tpu_custom_call.1} parent=27 // pred_region
          %s1234 = ssub.s32 16, 16
          %1235 = vsyncadd %s1214, %s1234
          %s1236 = smul.addr %s21, 16
          %s1237 = scalar_lea.hbm %s3, %s1236
          %s1239 = sshll.u32 %s1216, 4
          %s1240 = int_to_ptr.vmem [resolvable:$true] %s1239
          %1242 = dma.vmem_to_hbm [thread:$0]  %s1240, 16, %s1237, %s1214
        $region36: #{tpu_custom_call.1} parent=27 // pred_fallthru
          _
      $region28: #{tpu_custom_call.1} parent=5 // pred_fallthru
        _
      %p1243 = scmp.le.s32.totalorder 2, %s16
      // Predicated region
      $region37: #{tpu_custom_call.1} parent=5 // pred_check
        %p1244 = pneg %p1243
      $region38: #{tpu_custom_call.1} parent=5 // pred_check_branch
        %1246 = sbr.rel (%p1244) target = $region40
      $region39: #{tpu_custom_call.1} parent=5 // pred_region
        %s1247 = ssub.s32 %s16, 2
        // Predicated region
        $region41: #{tpu_custom_call.1} parent=39 // pred_check
          %p1248 = pneg %p92
        $region42: #{tpu_custom_call.1} parent=39 // pred_check_branch
          %1250 = sbr.rel (%p1248) target = $region44
        $region43: #{tpu_custom_call.1} parent=39 // pred_region
          %s1251 = sand.u32 %s77, 1
          %s1252 = scalar_lea.sflag [#allocation3], %s1251
          %s1253 = sand.u32 %s77, 1
          %s1254 = scalar_lea.vmem [#allocation2], %s1253
          %1255 = dma.done %s1252, 16
        $region44: #{tpu_custom_call.1} parent=39 // pred_fallthru
          _
        // Predicated region
        $region45: #{tpu_custom_call.1} parent=39 // pred_check
          %p1256 = pneg %p118
        $region46: #{tpu_custom_call.1} parent=39 // pred_check_branch
          %1258 = sbr.rel (%p1256) target = $region48
        $region47: #{tpu_custom_call.1} parent=39 // pred_region
          %s1259 = sand.u32 %s103, 1
          %s1260 = scalar_lea.sflag [#allocation5], %s1259
          %s1261 = sand.u32 %s103, 1
          %s1262 = scalar_lea.vmem [#allocation4], %s1261
          %1263 = dma.done %s1260, 16
        $region48: #{tpu_custom_call.1} parent=39 // pred_fallthru
          _
      $region40: #{tpu_custom_call.1} parent=5 // pred_fallthru
        _
    $region6: #{tpu_custom_call.1} parent=1 // loop_footer
      %s20 = sadd.s32 1, %s16
    $region7: #{tpu_custom_call.1} parent=1 // loop_footer_branch
      %15 = sbr.rel target = $region3
    $region8: #{tpu_custom_call.1} parent=1 // loop_exit
      _
    %1264 = vsyncpa [#allocation3], 1
    %s1265 = scalar_lea.sflag [#allocation3], 1
    %1266 = vsyncpa %s1265, 1
    %1267 = vsyncpa [#allocation5], 1
    %s1268 = scalar_lea.sflag [#allocation5], 1
    %1269 = vsyncpa %s1268, 1

</llo_original>
